<compile_context>
chip_gen: v7x
topology: tpu7x:2x2x1
jax: 0.10.0
libtpu: 0.0.40
codegen_flags: <defaults>
</compile_context>

<pallas_src>
import functools
from math import prod

import jax
import jax.numpy as jnp
from jax.experimental import pallas as pl
from jax.experimental.pallas import tpu as pltpu


_LANES = 128
_SUBLANES = 8
# Double-buffered block working-set target and the scoped-VMEM limit handed to
# Mosaic.  48 MiB < v7x's 64 MiB physical VMEM (with headroom) and is well
# below v5e/v6e's 128 MiB; the 32 MiB block budget keeps per-step useful HBM
# traffic in the ~2-3 MiB sweet spot of the tiled f32-add roofline curve.
_VMEM_BLOCK_BUDGET = 32 * 1024 * 1024
_VMEM_LIMIT = 48 * 1024 * 1024


def _round_up(x, m):
    return (x + m - 1) // m * m


def _choose_tile(m, n_obs):
    """Lane-tile size (multiple of 128) for the flat (n_obs, m) layout.

    Both passes tile only the flat element dimension; the (small) observable
    dimension stays whole inside every block.  The tile is sized so the
    double-buffered VMEM working set of the heavier pass stays inside
    _VMEM_BLOCK_BUDGET, accounting for the (8,128)/(32,128) sublane padding of
    f32/int8 VMEM blocks when n_obs is small.
    """
    sub_f32 = _round_up(max(n_obs, 1), 8)              # f32 VMEM sublane padding
    sub_i8 = _round_up(max(n_obs, 1), 32)              # int8 VMEM sublane padding
    per_lane_p1 = sub_f32 * 4 + sub_i8                 # probs(f32) + mask(i8)
    per_lane_p2 = _SUBLANES * 4 + sub_i8 + sub_f32 * 4  # t + mask + out
    per_lane = 2 * max(per_lane_p1, per_lane_p2)       # double-buffered
    tile = max(_LANES, _VMEM_BLOCK_BUDGET // per_lane // _LANES * _LANES)
    return min(tile, _round_up(m, _LANES))


# ----------------------------------------------------------------------------
# Pass 1: read probs once; write keep-mask (int8) + per-tile partial counts.
# Each grid step owns its own output blocks, so the axis is fully parallel.
# The ragged tail is neutralised with a global-column iota mask so boundary
# blocks never contribute garbage to the count.
# ----------------------------------------------------------------------------
def _mask_count_kernel(p_ref, probs_ref, mask_ref, partial_ref, *, m_valid, tile_m):
    start = pl.program_id(0) * tile_m
    col = start + jax.lax.broadcasted_iota(jnp.int32, probs_ref.shape, 1)
    keep = (probs_ref[...] <= p_ref[0]) & (col < m_valid)
    mask_ref[...] = keep.astype(jnp.int8)
    # Per-tile partial keep-count (int32; a tile never holds 2^31 elements).
    # The (8,128) broadcast store is ~4 KiB against ~2 MiB of useful per-step
    # traffic (<0.2%), and keeps the partials in a plain VMEM-tiled output.
    partial_ref[...] = jnp.full(partial_ref.shape,
                                jnp.sum(keep.astype(jnp.int32)), jnp.int32)


def _mask_and_count(probs2, p_arr, m, tile_m, num_tiles):
    n_obs = probs2.shape[0]
    kernel = functools.partial(_mask_count_kernel, m_valid=m, tile_m=tile_m)
    return pl.pallas_call(
        kernel,
        out_shape=(
            jax.ShapeDtypeStruct((n_obs, m), jnp.int8),                     # keep-mask
            jax.ShapeDtypeStruct((num_tiles, _SUBLANES, _LANES), jnp.int32),  # partial counts
        ),
        grid_spec=pltpu.PrefetchScalarGridSpec(
            num_scalar_prefetch=1,
            grid=(num_tiles,),
            in_specs=[pl.BlockSpec((n_obs, tile_m), lambda i, p: (0, i))],
            out_specs=(
                pl.BlockSpec((n_obs, tile_m), lambda i, p: (0, i)),
                pl.BlockSpec((1, _SUBLANES, _LANES), lambda i, p: (i, 0, 0)),
            ),
        ),
        compiler_params=pltpu.CompilerParams(
            dimension_semantics=("parallel",),
            vmem_limit_bytes=_VMEM_LIMIT),
    )(p_arr, probs2)


# ----------------------------------------------------------------------------
# Pass 2: out[obs, :] = where(mask, t * r, 0).  Consumes the 1-byte mask
# (instead of re-reading 4-byte probs); the t row block is shared across all
# observables within the block (one t read per element total).  r arrives as a
# runtime SMEM scalar.
# ----------------------------------------------------------------------------
def _apply_kernel(r_ref, t_ref, mask_ref, out_ref):
    keep = mask_ref[...] != 0                      # (n_obs, tile_m) bool
    scaled = t_ref[...] * r_ref[0]                 # (1, tile_m): fold r before select
    out_ref[...] = jnp.where(keep, scaled, 0.0).astype(out_ref.dtype)


def _apply_scaled_mask(t2, mask, r_arr, tile_m, num_tiles):
    n_obs, m = mask.shape
    return pl.pallas_call(
        _apply_kernel,
        out_shape=jax.ShapeDtypeStruct((n_obs, m), t2.dtype),
        grid_spec=pltpu.PrefetchScalarGridSpec(
            num_scalar_prefetch=1,
            grid=(num_tiles,),
            in_specs=[
                pl.BlockSpec((1, tile_m), lambda i, s: (0, i)),       # t row tile
                pl.BlockSpec((n_obs, tile_m), lambda i, s: (0, i)),   # int8 mask
            ],
            out_specs=pl.BlockSpec((n_obs, tile_m), lambda i, s: (0, i)),
        ),
        compiler_params=pltpu.CompilerParams(
            dimension_semantics=("parallel",),
            vmem_limit_bytes=_VMEM_LIMIT),
    )(r_arr, t2, mask)


# ----------------------------------------------------------------------------
# Wrapper reproducing QuantumDropout.forward (training mode).
# ----------------------------------------------------------------------------
def quantum_dropout_forward(t, probs, p, training=True):
    """t: (B, C, H, W); probs: (n_observables, B, N) with N = C*H*W.

    `p` must be a static Python float (it gates the early return, exactly like
    the torch module); its value is still handed to the kernels as a runtime
    SMEM scalar so sweeping p does not trigger recompilation.
    """
    if not training or p == 1:
        # Matches the module's early return (rank differs from the training path).
        return t
    n_obs, b = probs.shape[0], probs.shape[1]
    assert t.shape[0] == b, "Batch sizes of input and img do not match"
    n_inputs = prod(t.shape[1:])
    m = b * n_inputs

    probs2 = probs.reshape(n_obs, -1)              # free (contiguous) reshape
    assert probs2.shape[1] == m, "probs element count does not match t"
    t2 = t.reshape(1, m)                           # free reshape

    tile_m = _choose_tile(m, n_obs)
    num_tiles = pl.cdiv(m, tile_m)

    p_arr = jnp.asarray([p], dtype=probs2.dtype)
    mask, partials = _mask_and_count(probs2, p_arr, m, tile_m, num_tiles)

    # mask.sum(): int32 per-tile partials summed in XLA.  Overflow would need
    # >2^31 kept elements (~8 GiB of probs) -- out of scope for activations.
    count = jnp.sum(partials[:, 0, 0])
    r = jnp.float32(n_obs * m) / count.astype(jnp.float32)
    # NOTE: count == 0 makes r = inf; the select in pass 2 keeps every output
    # at exactly 0 (the torch module raises ZeroDivisionError instead).
    r_arr = jnp.reshape(r, (1,))

    out2 = _apply_scaled_mask(t2, mask, r_arr, tile_m, num_tiles)
    out = out2.reshape((n_obs,) + t.shape)         # free reshape, no slice/pad
    if n_obs == 1:
        out = out.reshape(t.shape)                 # matches torch reshape path
    return out
    # TODO(synk): per-class zero-fraction bookkeeping (self.p0, y labels) is a
    # host-side side effect with no Pallas equivalent; omitted.


if __name__ == "__main__":
    key = jax.random.PRNGKey(0)
    B, C, H, W = 2, 4, 16, 16
    n_obs = 2
    p = 0.5
    N = C * H * W

    k1, k2 = jax.random.split(key)
    t = jax.random.normal(k1, (B, C, H, W), dtype=jnp.float32)
    # TODO(synk): qiskit circuit construction/transpilation, AerSimulator runs,
    # sha256 distribution caching and random.choices outcome sampling have no
    # Pallas equivalent; the per-element keep probabilities they produce are
    # synthesized deterministically here instead.
    probs = jax.random.uniform(k2, (n_obs, B, N), dtype=jnp.float32)

    out = quantum_dropout_forward(t, probs, p)
    out = jax.block_until_ready(out)
    assert out.shape == (n_obs, B, C, H, W)

    # Pure-JAX reference of the masking/rescale semantics.
    mask = probs <= p
    r = mask.size / mask.sum()
    ref = (t.reshape(B, N)[None] * mask * r).reshape(n_obs, B, C, H, W)
    assert jnp.allclose(out, ref, rtol=1e-5, atol=1e-5)

    print("KERNEL_OK")
</pallas_src>

<mosaic_0001>
module attributes {stable_mosaic.version = 11 : i64} {
  func.func @_mask_count_kernel(%arg0: i32, %arg1: memref<1xf32, #tpu.memory_space<smem>>, %arg2: memref<2x2048xf32, #tpu.memory_space<vmem>>, %arg3: memref<2x2048xi8, #tpu.memory_space<vmem>>, %arg4: memref<1x8x128xi32, #tpu.memory_space<vmem>>) attributes {dimension_semantics = [#tpu.dimension_semantics<parallel>], iteration_bounds = array<i64: 1>, scalar_prefetch = 1 : i64, scratch_operands = 0 : i64, tpu.core_type = #tpu.core_type<tc>, window_params = [{transform_indices = @transform_0, window_bounds = array<i64: 2, 2048>}, {transform_indices = @transform_1, window_bounds = array<i64: 2, 2048>}, {transform_indices = @transform_2, window_bounds = array<i64: 1, 8, 128>}]} {
    %c2048_i32 = arith.constant 2048 : i32
    %0 = arith.muli %arg0, %c2048_i32 : i32
    %1 = tpu.iota {dimensions = array<i32: 1>} : vector<2x2048xi32>
    %2 = vector.broadcast %0 : i32 to vector<2x2048xi32>
    %3 = arith.addi %2, %1 : vector<2x2048xi32>
    %c0 = arith.constant 0 : index
    %c0_0 = arith.constant 0 : index
    %4 = vector.load %arg2[%c0, %c0_0] : memref<2x2048xf32, #tpu.memory_space<vmem>>, vector<2x2048xf32>
    %c0_1 = arith.constant 0 : index
    %5 = memref.load %arg1[%c0_1] : memref<1xf32, #tpu.memory_space<smem>>
    %6 = vector.broadcast %5 : f32 to vector<2x2048xf32>
    %7 = arith.cmpf ole, %4, %6 : vector<2x2048xf32>
    %c2048_i32_2 = arith.constant 2048 : i32
    %8 = vector.broadcast %c2048_i32_2 : i32 to vector<2x2048xi32>
    %9 = arith.cmpi slt, %3, %8 : vector<2x2048xi32>
    %10 = arith.andi %7, %9 : vector<2x2048xi1>
    %11 = arith.extui %10 : vector<2x2048xi1> to vector<2x2048xi8>
    %c0_3 = arith.constant 0 : index
    %c0_4 = arith.constant 0 : index
    %12 = vector.load %arg3[%c0_3, %c0_4] : memref<2x2048xi8, #tpu.memory_space<vmem>>, vector<2x2048xi8>
    tpu.vector_store %arg3[%c0_3, %c0_4], %11 {strides = array<i32>} : memref<2x2048xi8, #tpu.memory_space<vmem>>, vector<2x2048xi8>,
    %13 = arith.extui %10 : vector<2x2048xi1> to vector<2x2048xi32>
    %14 = vector.shape_cast %13 : vector<2x2048xi32> to vector<1x2x2048xi32>
    %cst = arith.constant dense<0> : vector<1xi32>
    %15 = vector.multi_reduction <add>, %14, %cst [1, 2] : vector<1x2x2048xi32> to vector<1xi32>
    %16 = vector.shape_cast %15 : vector<1xi32> to vector<1x1x1xi32>
    %17 = vector.extract %16[0, 0, 0] : i32 from vector<1x1x1xi32>
    %18 = vector.broadcast %17 : i32 to vector<1x8x128xi32>
    %c0_5 = arith.constant 0 : index
    %c0_6 = arith.constant 0 : index
    %c0_7 = arith.constant 0 : index
    %19 = vector.load %arg4[%c0_5, %c0_6, %c0_7] : memref<1x8x128xi32, #tpu.memory_space<vmem>>, vector<1x8x128xi32>
    tpu.vector_store %arg4[%c0_5, %c0_6, %c0_7], %18 {strides = array<i32>} : memref<1x8x128xi32, #tpu.memory_space<vmem>>, vector<1x8x128xi32>,
    return
  }
  func.func @transform_0(%arg0: i32, %arg1: memref<1xf32, #tpu.memory_space<smem>>) -> (i32, i32) {
    %c0_i32 = arith.constant 0 : i32
    %c0_i32_0 = arith.constant 0 : i32
    return %c0_i32, %arg0 : i32, i32
  }
  func.func @transform_1(%arg0: i32, %arg1: memref<1xf32, #tpu.memory_space<smem>>) -> (i32, i32) {
    %c0_i32 = arith.constant 0 : i32
    %c0_i32_0 = arith.constant 0 : i32
    return %c0_i32, %arg0 : i32, i32
  }
  func.func @transform_2(%arg0: i32, %arg1: memref<1xf32, #tpu.memory_space<smem>>) -> (i32, i32, i32) {
    %c0_i32 = arith.constant 0 : i32
    %c0_i32_0 = arith.constant 0 : i32
    %c0_i32_1 = arith.constant 0 : i32
    return %arg0, %c0_i32, %c0_i32_0 : i32, i32, i32
  }
}

</mosaic_0001>

<llo_original>
// kernel: tpu_custom_call.1
$region0: #{tpu_custom_call.1}
  #allocation0 [shape = 'u32[]', space=smem, size = 0x4, offset = 0x4, fixed_abs, tag = 'smem constant byte address 0x4 - core index']
  #allocation1 [shape = 'u32[144,128]{1,0:T(1,128)}', space=vmem, size = 0x12000, scoped, tag = 'internal scratch']
  #allocation2 [shape = 's32[1]{0}', space=sflag, size = 0x4, scoped, tag = 'scoped memory for tpu_custom_call.1']
  #allocation3 [shape = 'f32[1]{0:T(128)S(6)}', space=smem, size = 0x200, scoped, tag = 'prefetched SMEM operand 0']
  %s0 = inlined_call_operand.<no memory space> [shape: f32[1], index: 0, kind: input, shape index: {}]
  %s1 = inlined_call_operand.hbm [shape: f32[2,2048], index: 1, kind: input, shape index: {}]
  %s2 = inlined_call_operand.hbm [shape: s8[2,2048], index: 2, kind: output, shape index: {0}]
  %s3 = inlined_call_operand.hbm [shape: s32[1,8,128], index: 3, kind: output, shape index: {1}]
  %4 = xla_tuple %s2, %s3
  %s5 = sld [smem:[#allocation0]]
  $region26: #{tpu_custom_call.1} parent=0
    _
  %s7 = ssub.s32 1, %s5
  %s8 = scalar_select 0, %s7, %s5
  %9 = sst [smem:[#allocation3]] %s0
  $region1: #{tpu_custom_call.1} parent=0
    #allocation4 [shape = 'u8[16384]{0}', space=vmem, size = 0x4000, scoped, tag = 'input window, operand 1, single buffered']
    #allocation5 [shape = 's32[1]{0}', space=sflag, size = 0x4, scoped, tag = 'scoped memory for tpu_custom_call.1']
    #allocation6 [shape = 's32[1]{0}', space=sflag, size = 0x4, scoped, tag = 'scoped memory for tpu_custom_call.1']
    #allocation7 [shape = 'u8[8192]{0}', space=vmem, size = 0x2000, scoped, tag = 'output window, operand 0, single buffered']
    #allocation8 [shape = 'u8[4096]{0}', space=vmem, size = 0x1000, scoped, tag = 'output window, operand 1, single buffered']
    #allocation9 [shape = 's32[1]{0}', space=sflag, size = 0x4, scoped, tag = 'scoped memory for tpu_custom_call.1']
    %10 = vsyncpa [#allocation5], 0
    %11 = vsyncpa [#allocation6], 0
    %12 = vsyncpa [#allocation9], 0
    // Predicated region
    $region2: #{tpu_custom_call.1} parent=1 // pred_check
      _
    $region3: #{tpu_custom_call.1} parent=1 // pred_check_branch
      %14 = sbr.rel (0) target = $region5
    $region4: #{tpu_custom_call.1} parent=1 // pred_region
      %s16 = ssub.s32 512, 512
      %17 = vsyncadd [#allocation5], %s16
      %s19 = sshll.u32 [#allocation4], 4
      %s20 = int_to_ptr.vmem [resolvable:$true] %s19
      %22 = dma.hbm_to_vmem [thread:$0]  %s1, 512, %s20, [#allocation5]
    $region5: #{tpu_custom_call.1} parent=1 // pred_fallthru
      _
    // Predicated region
    $region6: #{tpu_custom_call.1} parent=1 // pred_check
      _
    $region7: #{tpu_custom_call.1} parent=1 // pred_check_branch
      %24 = sbr.rel (0) target = $region9
    $region8: #{tpu_custom_call.1} parent=1 // pred_region
      %25 = dma.done [#allocation5], 512
    $region9: #{tpu_custom_call.1} parent=1 // pred_fallthru
      _
    %s28 = smul.u32 0, 2048
    %v29 = vlaneseq
    %v30 = vand.u32 %v29, 127
    %v31 = vadd.s32 %v30, 128
    %v32 = vadd.s32 %v30, 256
    %v33 = vadd.s32 %v30, 384
    %v34 = vadd.s32 %v30, 512
    %v35 = vadd.s32 %v30, 640
    %v36 = vadd.s32 %v30, 768
    %v37 = vadd.s32 %v30, 896
    %v38 = vadd.s32 %v30, 1024
    %v39 = vadd.s32 %v30, 1152
    %v40 = vadd.s32 %v30, 1280
    %v41 = vadd.s32 %v30, 1408
    %v42 = vadd.s32 %v30, 1536
    %v43 = vadd.s32 %v30, 1664
    %v44 = vadd.s32 %v30, 1792
    %v45 = vadd.s32 %v30, 1920
    %v46 = vstv %s28
    %v47 = vadd.s32 %v46, %v30
    %v48 = vadd.s32 %v46, %v31
    %v49 = vadd.s32 %v46, %v32
    %v50 = vadd.s32 %v46, %v33
    %v51 = vadd.s32 %v46, %v34
    %v52 = vadd.s32 %v46, %v35
    %v53 = vadd.s32 %v46, %v36
    %v54 = vadd.s32 %v46, %v37
    %v55 = vadd.s32 %v46, %v38
    %v56 = vadd.s32 %v46, %v39
    %v57 = vadd.s32 %v46, %v40
    %v58 = vadd.s32 %v46, %v41
    %v59 = vadd.s32 %v46, %v42
    %v60 = vadd.s32 %v46, %v43
    %v61 = vadd.s32 %v46, %v44
    %v62 = vadd.s32 %v46, %v45
    %v63 = vld [vmem:[#allocation4] sm:$0xff]
    %v64 = vld [vmem:[#allocation4 + $0x8] sm:$0xff]
    %v65 = vld [vmem:[#allocation4 + $0x10] sm:$0xff]
    %v66 = vld [vmem:[#allocation4 + $0x18] sm:$0xff]
    %s67 = sld [smem:[#allocation3]]
    %v68 = vstv %s67
    %vm69 = vcmp.le.f32.partialorder %v63, %v68
    %vm70 = vcmp.le.f32.partialorder %v64, %v68
    %vm71 = vcmp.le.f32.partialorder %v65, %v68
    %vm72 = vcmp.le.f32.partialorder %v66, %v68
    %vm73 = vcmp.lt.s32.totalorder %v47, 2048
    %vm74 = vcmp.lt.s32.totalorder %v48, 2048
    %vm75 = vcmp.lt.s32.totalorder %v49, 2048
    %vm76 = vcmp.lt.s32.totalorder %v50, 2048
    %vm77 = vcmp.lt.s32.totalorder %v51, 2048
    %vm78 = vcmp.lt.s32.totalorder %v52, 2048
    %vm79 = vcmp.lt.s32.totalorder %v53, 2048
    %vm80 = vcmp.lt.s32.totalorder %v54, 2048
    %vm81 = vcmp.lt.s32.totalorder %v55, 2048
    %vm82 = vcmp.lt.s32.totalorder %v56, 2048
    %vm83 = vcmp.lt.s32.totalorder %v57, 2048
    %vm84 = vcmp.lt.s32.totalorder %v58, 2048
    %vm85 = vcmp.lt.s32.totalorder %v59, 2048
    %vm86 = vcmp.lt.s32.totalorder %v60, 2048
    %vm87 = vcmp.lt.s32.totalorder %v61, 2048
    %vm88 = vcmp.lt.s32.totalorder %v62, 2048
    %v89 = vsel %vm73, 1, 0
    %v90 = vsel %vm74, 1, 0
    %v91 = vsel %vm75, 1, 0
    %v92 = vsel %vm76, 1, 0
    %v93 = vsel %vm77, 1, 0
    %v94 = vsel %vm78, 1, 0
    %v95 = vsel %vm79, 1, 0
    %v96 = vsel %vm80, 1, 0
    %v97 = vsel %vm81, 1, 0
    %v98 = vsel %vm82, 1, 0
    %v99 = vsel %vm83, 1, 0
    %v100 = vsel %vm84, 1, 0
    %v101 = vsel %vm85, 1, 0
    %v102 = vsel %vm86, 1, 0
    %v103 = vsel %vm87, 1, 0
    %v104 = vsel %vm88, 1, 0
    %v105 = vcombine.low %v89, %v90
    %v106 = vcombine.low %v91, %v92
    %v108 = vunpack.c.l.s4 1983009808
    %v109 = vunpack.c.0.s8 %v108
    %v110 = vlaneseq
    %v111 = vshrl.u32 %v110, 7
    %v112 = vsub.s32 %v109, %v111
    %v113 = vrot.slane %v105, %v112
    %v115 = vunpack.c.l.s4 1983009808
    %v116 = vunpack.c.0.s8 %v115
    %v117 = vlaneseq
    %v118 = vshrl.u32 %v117, 7
    %v119 = vsub.s32 %v116, %v118
    %v120 = vrot.slane %v106, %v119
    %v121 = vcombine.low %v113, %v120
    %v122 = vcombine.low %v93, %v94
    %v123 = vcombine.low %v95, %v96
    %v125 = vunpack.c.l.s4 1983009808
    %v126 = vunpack.c.0.s8 %v125
    %v127 = vlaneseq
    %v128 = vshrl.u32 %v127, 7
    %v129 = vsub.s32 %v126, %v128
    %v130 = vrot.slane %v122, %v129
    %v132 = vunpack.c.l.s4 1983009808
    %v133 = vunpack.c.0.s8 %v132
    %v134 = vlaneseq
    %v135 = vshrl.u32 %v134, 7
    %v136 = vsub.s32 %v133, %v135
    %v137 = vrot.slane %v123, %v136
    %v138 = vcombine.low %v130, %v137
    %v139 = vcombine.low %v97, %v98
    %v140 = vcombine.low %v99, %v100
    %v142 = vunpack.c.l.s4 1983009808
    %v143 = vunpack.c.0.s8 %v142
    %v144 = vlaneseq
    %v145 = vshrl.u32 %v144, 7
    %v146 = vsub.s32 %v143, %v145
    %v147 = vrot.slane %v139, %v146
    %v149 = vunpack.c.l.s4 1983009808
    %v150 = vunpack.c.0.s8 %v149
    %v151 = vlaneseq
    %v152 = vshrl.u32 %v151, 7
    %v153 = vsub.s32 %v150, %v152
    %v154 = vrot.slane %v140, %v153
    %v155 = vcombine.low %v147, %v154
    %v156 = vcombine.low %v101, %v102
    %v157 = vcombine.low %v103, %v104
    %v159 = vunpack.c.l.s4 1983009808
    %v160 = vunpack.c.0.s8 %v159
    %v161 = vlaneseq
    %v162 = vshrl.u32 %v161, 7
    %v163 = vsub.s32 %v160, %v162
    %v164 = vrot.slane %v156, %v163
    %v166 = vunpack.c.l.s4 1983009808
    %v167 = vunpack.c.0.s8 %v166
    %v168 = vlaneseq
    %v169 = vshrl.u32 %v168, 7
    %v170 = vsub.s32 %v167, %v169
    %v171 = vrot.slane %v157, %v170
    %v172 = vcombine.low %v164, %v171
    %vm173 = vcmp.ne.s32.totalorder %v121, 0
    %vm174 = vcmp.ne.s32.totalorder %v138, 0
    %vm175 = vcmp.ne.s32.totalorder %v155, 0
    %vm176 = vcmp.ne.s32.totalorder %v172, 0
    %vm177 = vmand %vm69, %vm173
    %vm178 = vmand %vm70, %vm174
    %vm179 = vmand %vm71, %vm175
    %vm180 = vmand %vm72, %vm176
    %v181 = vsel %vm177, 1, 0
    %v182 = vsel %vm178, 1, 0
    %v183 = vsel %vm179, 1, 0
    %v184 = vsel %vm180, 1, 0
    %v185 = vcombine.high %v181, %v181
    %v187 = vunpack.c.l.s4 1983009808
    %v188 = vunpack.c.0.s8 %v187
    %v189 = vlaneseq
    %v190 = vshrl.u32 %v189, 7
    %v191 = vsub.s32 %v188, %v190
    %v192 = vrot.slane %v181, %v191
    %v194 = vunpack.c.l.s4 1983009808
    %v195 = vunpack.c.0.s8 %v194
    %v196 = vlaneseq
    %v197 = vshrl.u32 %v196, 7
    %v198 = vsub.s32 %v195, %v197
    %v199 = vrot.slane %v185, %v198
    %v200 = vcombine.high %v182, %v182
    %v202 = vunpack.c.l.s4 1983009808
    %v203 = vunpack.c.0.s8 %v202
    %v204 = vlaneseq
    %v205 = vshrl.u32 %v204, 7
    %v206 = vsub.s32 %v203, %v205
    %v207 = vrot.slane %v182, %v206
    %v209 = vunpack.c.l.s4 1983009808
    %v210 = vunpack.c.0.s8 %v209
    %v211 = vlaneseq
    %v212 = vshrl.u32 %v211, 7
    %v213 = vsub.s32 %v210, %v212
    %v214 = vrot.slane %v200, %v213
    %v215 = vcombine.high %v183, %v183
    %v217 = vunpack.c.l.s4 1983009808
    %v218 = vunpack.c.0.s8 %v217
    %v219 = vlaneseq
    %v220 = vshrl.u32 %v219, 7
    %v221 = vsub.s32 %v218, %v220
    %v222 = vrot.slane %v183, %v221
    %v224 = vunpack.c.l.s4 1983009808
    %v225 = vunpack.c.0.s8 %v224
    %v226 = vlaneseq
    %v227 = vshrl.u32 %v226, 7
    %v228 = vsub.s32 %v225, %v227
    %v229 = vrot.slane %v215, %v228
    %v230 = vcombine.high %v184, %v184
    %v232 = vunpack.c.l.s4 1983009808
    %v233 = vunpack.c.0.s8 %v232
    %v234 = vlaneseq
    %v235 = vshrl.u32 %v234, 7
    %v236 = vsub.s32 %v233, %v235
    %v237 = vrot.slane %v184, %v236
    %v239 = vunpack.c.l.s4 1983009808
    %v240 = vunpack.c.0.s8 %v239
    %v241 = vlaneseq
    %v242 = vshrl.u32 %v241, 7
    %v243 = vsub.s32 %v240, %v242
    %v244 = vrot.slane %v230, %v243
    %vm245 = vcmp.ne.s32.totalorder %v192, 0
    %vm246 = vcmp.ne.s32.totalorder %v199, 0
    %vm247 = vcmp.ne.s32.totalorder %v207, 0
    %vm248 = vcmp.ne.s32.totalorder %v214, 0
    %vm249 = vcmp.ne.s32.totalorder %v222, 0
    %vm250 = vcmp.ne.s32.totalorder %v229, 0
    %vm251 = vcmp.ne.s32.totalorder %v237, 0
    %vm252 = vcmp.ne.s32.totalorder %v244, 0
    %v253 = vsel %vm245, 1, 0
    %v254 = vsel %vm246, 1, 0
    %v255 = vsel %vm247, 1, 0
    %v256 = vsel %vm248, 1, 0
    %v257 = vsel %vm249, 1, 0
    %v258 = vsel %vm250, 1, 0
    %v259 = vsel %vm251, 1, 0
    %v260 = vsel %vm252, 1, 0
    %v261 = vpack.c.b16 %v254, %v253
    %v262 = vpack.c.b16 %v256, %v255
    %v263 = vpack.c.b8 %v262, %v261
    %v264 = vpack.c.b16 %v258, %v257
    %v265 = vpack.c.b16 %v260, %v259
    %v266 = vpack.c.b8 %v265, %v264
    %vm267 = vnez %v263
    %vm268 = vnez %v266
    %v269 = vsel %vm267, 16843009, 0
    %v270 = vsel %vm268, 16843009, 0
    %v271 = vcombine.high %v269, %v269
    %v273 = vunpack.c.l.s4 1966171168
    %v274 = vunpack.c.0.s8 %v273
    %v275 = vlaneseq
    %v276 = vshrl.u32 %v275, 7
    %v277 = vsub.s32 %v274, %v276
    %v278 = vrot.slane %v269, %v277
    %v280 = vunpack.c.l.s4 1966171168
    %v281 = vunpack.c.0.s8 %v280
    %v282 = vlaneseq
    %v283 = vshrl.u32 %v282, 7
    %v284 = vsub.s32 %v281, %v283
    %v285 = vrot.slane %v271, %v284
    %v286 = vcombine.high %v278, %v278
    %v287 = vcombine.high %v285, %v285
    %v289 = vunpack.c.l.s4 1966171168
    %v290 = vunpack.c.0.s8 %v289
    %v291 = vlaneseq
    %v292 = vshrl.u32 %v291, 7
    %v293 = vsub.s32 %v290, %v292
    %v294 = vrot.slane %v278, %v293
    %v296 = vunpack.c.l.s4 1966171168
    %v297 = vunpack.c.0.s8 %v296
    %v298 = vlaneseq
    %v299 = vshrl.u32 %v298, 7
    %v300 = vsub.s32 %v297, %v299
    %v301 = vrot.slane %v285, %v300
    %v303 = vunpack.c.l.s4 1966171168
    %v304 = vunpack.c.0.s8 %v303
    %v305 = vlaneseq
    %v306 = vshrl.u32 %v305, 7
    %v307 = vsub.s32 %v304, %v306
    %v308 = vrot.slane %v286, %v307
    %v310 = vunpack.c.l.s4 1966171168
    %v311 = vunpack.c.0.s8 %v310
    %v312 = vlaneseq
    %v313 = vshrl.u32 %v312, 7
    %v314 = vsub.s32 %v311, %v313
    %v315 = vrot.slane %v287, %v314
    %v316 = vcombine.high %v294, %v294
    %v317 = vcombine.high %v301, %v301
    %v318 = vcombine.high %v308, %v308
    %v319 = vcombine.high %v315, %v315
    %v320 = vcombine.high %v270, %v270
    %v322 = vunpack.c.l.s4 1966171168
    %v323 = vunpack.c.0.s8 %v322
    %v324 = vlaneseq
    %v325 = vshrl.u32 %v324, 7
    %v326 = vsub.s32 %v323, %v325
    %v327 = vrot.slane %v270, %v326
    %v329 = vunpack.c.l.s4 1966171168
    %v330 = vunpack.c.0.s8 %v329
    %v331 = vlaneseq
    %v332 = vshrl.u32 %v331, 7
    %v333 = vsub.s32 %v330, %v332
    %v334 = vrot.slane %v320, %v333
    %v335 = vcombine.high %v327, %v327
    %v336 = vcombine.high %v334, %v334
    %v338 = vunpack.c.l.s4 1966171168
    %v339 = vunpack.c.0.s8 %v338
    %v340 = vlaneseq
    %v341 = vshrl.u32 %v340, 7
    %v342 = vsub.s32 %v339, %v341
    %v343 = vrot.slane %v327, %v342
    %v345 = vunpack.c.l.s4 1966171168
    %v346 = vunpack.c.0.s8 %v345
    %v347 = vlaneseq
    %v348 = vshrl.u32 %v347, 7
    %v349 = vsub.s32 %v346, %v348
    %v350 = vrot.slane %v334, %v349
    %v352 = vunpack.c.l.s4 1966171168
    %v353 = vunpack.c.0.s8 %v352
    %v354 = vlaneseq
    %v355 = vshrl.u32 %v354, 7
    %v356 = vsub.s32 %v353, %v355
    %v357 = vrot.slane %v335, %v356
    %v359 = vunpack.c.l.s4 1966171168
    %v360 = vunpack.c.0.s8 %v359
    %v361 = vlaneseq
    %v362 = vshrl.u32 %v361, 7
    %v363 = vsub.s32 %v360, %v362
    %v364 = vrot.slane %v336, %v363
    %v365 = vcombine.high %v343, %v343
    %v366 = vcombine.high %v350, %v350
    %v367 = vcombine.high %v357, %v357
    %v368 = vcombine.high %v364, %v364
    %vm369 = vnez %v294
    %vm370 = vnez %v308
    %vm371 = vnez %v316
    %vm372 = vnez %v318
    %vm373 = vnez %v301
    %vm374 = vnez %v315
    %vm375 = vnez %v317
    %vm376 = vnez %v319
    %vm377 = vnez %v343
    %vm378 = vnez %v357
    %vm379 = vnez %v365
    %vm380 = vnez %v367
    %vm381 = vnez %v350
    %vm382 = vnez %v364
    %vm383 = vnez %v366
    %vm384 = vnez %v368
    %v385 = vsel %vm369, 16843009, 0
    %v386 = vsel %vm370, 16843009, 0
    %v387 = vsel %vm371, 16843009, 0
    %v388 = vsel %vm372, 16843009, 0
    %v389 = vsel %vm373, 16843009, 0
    %v390 = vsel %vm374, 16843009, 0
    %v391 = vsel %vm375, 16843009, 0
    %v392 = vsel %vm376, 16843009, 0
    %v393 = vsel %vm377, 16843009, 0
    %v394 = vsel %vm378, 16843009, 0
    %v395 = vsel %vm379, 16843009, 0
    %v396 = vsel %vm380, 16843009, 0
    %v397 = vsel %vm381, 16843009, 0
    %v398 = vsel %vm382, 16843009, 0
    %v399 = vsel %vm383, 16843009, 0
    %v400 = vsel %vm384, 16843009, 0
    %v401 = vcombine.low %v385, %v386
    %v402 = vcombine.low %v387, %v388
    %v403 = vcombine.low %v389, %v390
    %v404 = vcombine.low %v391, %v392
    %v406 = vunpack.c.l.s4 1966171168
    %v407 = vunpack.c.0.s8 %v406
    %v408 = vlaneseq
    %v409 = vshrl.u32 %v408, 7
    %v410 = vsub.s32 %v407, %v409
    %v411 = vrot.slane %v401, %v410
    %v413 = vunpack.c.l.s4 1966171168
    %v414 = vunpack.c.0.s8 %v413
    %v415 = vlaneseq
    %v416 = vshrl.u32 %v415, 7
    %v417 = vsub.s32 %v414, %v416
    %v418 = vrot.slane %v402, %v417
    %v420 = vunpack.c.l.s4 1966171168
    %v421 = vunpack.c.0.s8 %v420
    %v422 = vlaneseq
    %v423 = vshrl.u32 %v422, 7
    %v424 = vsub.s32 %v421, %v423
    %v425 = vrot.slane %v403, %v424
    %v427 = vunpack.c.l.s4 1966171168
    %v428 = vunpack.c.0.s8 %v427
    %v429 = vlaneseq
    %v430 = vshrl.u32 %v429, 7
    %v431 = vsub.s32 %v428, %v430
    %v432 = vrot.slane %v404, %v431
    %v433 = vcombine.low %v411, %v418
    %v434 = vcombine.low %v425, %v432
    %v436 = vunpack.c.l.s4 1966171168
    %v437 = vunpack.c.0.s8 %v436
    %v438 = vlaneseq
    %v439 = vshrl.u32 %v438, 7
    %v440 = vsub.s32 %v437, %v439
    %v441 = vrot.slane %v433, %v440
    %v443 = vunpack.c.l.s4 1966171168
    %v444 = vunpack.c.0.s8 %v443
    %v445 = vlaneseq
    %v446 = vshrl.u32 %v445, 7
    %v447 = vsub.s32 %v444, %v446
    %v448 = vrot.slane %v434, %v447
    %v449 = vcombine.low %v441, %v448
    %v450 = vcombine.low %v393, %v394
    %v451 = vcombine.low %v395, %v396
    %v452 = vcombine.low %v397, %v398
    %v453 = vcombine.low %v399, %v400
    %v455 = vunpack.c.l.s4 1966171168
    %v456 = vunpack.c.0.s8 %v455
    %v457 = vlaneseq
    %v458 = vshrl.u32 %v457, 7
    %v459 = vsub.s32 %v456, %v458
    %v460 = vrot.slane %v450, %v459
    %v462 = vunpack.c.l.s4 1966171168
    %v463 = vunpack.c.0.s8 %v462
    %v464 = vlaneseq
    %v465 = vshrl.u32 %v464, 7
    %v466 = vsub.s32 %v463, %v465
    %v467 = vrot.slane %v451, %v466
    %v469 = vunpack.c.l.s4 1966171168
    %v470 = vunpack.c.0.s8 %v469
    %v471 = vlaneseq
    %v472 = vshrl.u32 %v471, 7
    %v473 = vsub.s32 %v470, %v472
    %v474 = vrot.slane %v452, %v473
    %v476 = vunpack.c.l.s4 1966171168
    %v477 = vunpack.c.0.s8 %v476
    %v478 = vlaneseq
    %v479 = vshrl.u32 %v478, 7
    %v480 = vsub.s32 %v477, %v479
    %v481 = vrot.slane %v453, %v480
    %v482 = vcombine.low %v460, %v467
    %v483 = vcombine.low %v474, %v481
    %v485 = vunpack.c.l.s4 1966171168
    %v486 = vunpack.c.0.s8 %v485
    %v487 = vlaneseq
    %v488 = vshrl.u32 %v487, 7
    %v489 = vsub.s32 %v486, %v488
    %v490 = vrot.slane %v482, %v489
    %v492 = vunpack.c.l.s4 1966171168
    %v493 = vunpack.c.0.s8 %v492
    %v494 = vlaneseq
    %v495 = vshrl.u32 %v494, 7
    %v496 = vsub.s32 %v493, %v495
    %v497 = vrot.slane %v483, %v496
    %v498 = vcombine.low %v490, %v497
    %vm499 = vcmask 1040384
    %vm500 = vsmask.f32 256
    %vm501 = vmand %vm499, %vm500
    %vm502 = vcmask 1041409
    %vm503 = vsmask.f32 1280
    %vm504 = vmand %vm502, %vm503
    %vm505 = vmor %vm504, %vm501
    %vm506 = vcmask 1042434
    %vm507 = vsmask.f32 2304
    %vm508 = vmand %vm506, %vm507
    %vm509 = vmor %vm508, %vm505
    %vm510 = vcmask 1043459
    %vm511 = vsmask.f32 3328
    %vm512 = vmand %vm510, %vm511
    %vm513 = vmor %vm512, %vm509
    %vm514 = vcmask 1044484
    %vm515 = vsmask.f32 4352
    %vm516 = vmand %vm514, %vm515
    %vm517 = vmor %vm516, %vm513
    %vm518 = vcmask 1045509
    %vm519 = vsmask.f32 5376
    %vm520 = vmand %vm518, %vm519
    %vm521 = vmor %vm520, %vm517
    %vm522 = vcmask 1046534
    %vm523 = vsmask.f32 6400
    %vm524 = vmand %vm522, %vm523
    %vm525 = vmor %vm524, %vm521
    %vm526 = vcmask 1047559
    %vm527 = vsmask.f32 7424
    %vm528 = vmand %vm526, %vm527
    %vm529 = vmor %vm528, %vm525
    %v530 = vld [vmem:[#allocation7] sm:$0xff]
    %v531 = vsel %vm529, %v449, %v530
    %532 = vst [vmem:[#allocation7] sm:$0xff] %v531
    %v533 = vld [vmem:[#allocation7 + $0x8] sm:$0xff]
    %v534 = vsel %vm529, %v498, %v533
    %535 = vst [vmem:[#allocation7 + $0x8] sm:$0xff] %v534
    %v536 = vcombine.high %v192, %v192
    %v537 = vcombine.high %v199, %v199
    %v538 = vcombine.high %v207, %v207
    %v539 = vcombine.high %v214, %v214
    %v540 = vcombine.high %v222, %v222
    %v541 = vcombine.high %v229, %v229
    %v542 = vcombine.high %v237, %v237
    %v543 = vcombine.high %v244, %v244
    %vm544 = vcmask 1041408
    %v545 = vsel %vm544, %v192, 0
    %v546 = vsel %vm544, %v536, 0
    %v547 = vsel %vm544, %v199, 0
    %v548 = vsel %vm544, %v537, 0
    %v549 = vsel %vm544, %v207, 0
    %v550 = vadd.s32 %v545, %v549
    %v551 = vsel %vm544, %v538, 0
    %v552 = vadd.s32 %v546, %v551
    %v553 = vsel %vm544, %v214, 0
    %v554 = vadd.s32 %v547, %v553
    %v555 = vsel %vm544, %v539, 0
    %v556 = vadd.s32 %v548, %v555
    %v557 = vsel %vm544, %v222, 0
    %v558 = vadd.s32 %v550, %v557
    %v559 = vsel %vm544, %v540, 0
    %v560 = vadd.s32 %v552, %v559
    %v561 = vsel %vm544, %v229, 0
    %v562 = vadd.s32 %v554, %v561
    %v563 = vsel %vm544, %v541, 0
    %v564 = vadd.s32 %v556, %v563
    %v565 = vsel %vm544, %v237, 0
    %v566 = vadd.s32 %v558, %v565
    %v567 = vsel %vm544, %v542, 0
    %v568 = vadd.s32 %v560, %v567
    %v569 = vsel %vm544, %v244, 0
    %v570 = vadd.s32 %v562, %v569
    %v571 = vsel %vm544, %v543, 0
    %v572 = vadd.s32 %v564, %v571
    %v573 = vadd.s32 %v566, %v568
    %v574 = vadd.s32 %v570, %v572
    %v575 = vadd.s32 %v573, %v574
    %v576 = vand.u32 %v575, 65535
    %v577 = vshrl.u32 %v575, 16
    %v578 = vcvt.s32.f32 %v576
    %v579 = vcvt.s32.f32 %v577
    %580 = vadd.xlane.f32.xlu0 %v578
    %v581 = vpop.xlane.xlu0 %580
    %582 = vadd.xlane.f32.xlu0 %v579
    %v583 = vpop.xlane.xlu0 %582
    %v584 = vcvt.f32.s32 %v581
    %v585 = vcvt.f32.s32 %v583
    %v586 = vshll.u32 %v585, 16
    %v587 = vadd.s32 %v586, %v584
    %v588 = vrot.slane %v587, 4
    %v589 = vadd.s32 %v587, %v588
    %v590 = vrot.slane %v589, 2
    %v591 = vadd.s32 %v589, %v590
    %v592 = vrot.slane %v591, 1
    %v593 = vadd.s32 %v591, %v592
    %s594 = vtos %v593
    %v595 = vstv %s594
    %596 = vst [vmem:[#allocation8] sm:$0xff] %v595
    // Predicated region
    $region10: #{tpu_custom_call.1} parent=1 // pred_check
      _
    $region11: #{tpu_custom_call.1} parent=1 // pred_check_branch
      %598 = sbr.rel (0) target = $region13
    $region12: #{tpu_custom_call.1} parent=1 // pred_region
      %s600 = ssub.s32 256, 256
      %601 = vsyncadd [#allocation6], %s600
      %s603 = sshll.u32 [#allocation7], 4
      %s604 = int_to_ptr.vmem [resolvable:$true] %s603
      %606 = dma.vmem_to_hbm [thread:$0]  %s604, 256, %s2, [#allocation6]
    $region13: #{tpu_custom_call.1} parent=1 // pred_fallthru
      _
    // Predicated region
    $region14: #{tpu_custom_call.1} parent=1 // pred_check
      _
    $region15: #{tpu_custom_call.1} parent=1 // pred_check_branch
      %608 = sbr.rel (0) target = $region17
    $region16: #{tpu_custom_call.1} parent=1 // pred_region
      %s610 = ssub.s32 128, 128
      %611 = vsyncadd [#allocation9], %s610
      %s613 = sshll.u32 [#allocation8], 4
      %s614 = int_to_ptr.vmem [resolvable:$true] %s613
      %616 = dma.vmem_to_hbm [thread:$0]  %s614, 128, %s3, [#allocation9]
    $region17: #{tpu_custom_call.1} parent=1 // pred_fallthru
      _
    // Predicated region
    $region18: #{tpu_custom_call.1} parent=1 // pred_check
      _
    $region19: #{tpu_custom_call.1} parent=1 // pred_check_branch
      %618 = sbr.rel (0) target = $region21
    $region20: #{tpu_custom_call.1} parent=1 // pred_region
      %619 = dma.done [#allocation6], 256
    $region21: #{tpu_custom_call.1} parent=1 // pred_fallthru
      _
    // Predicated region
    $region22: #{tpu_custom_call.1} parent=1 // pred_check
      _
    $region23: #{tpu_custom_call.1} parent=1 // pred_check_branch
      %621 = sbr.rel (0) target = $region25
    $region24: #{tpu_custom_call.1} parent=1 // pred_region
      %622 = dma.done [#allocation9], 128
    $region25: #{tpu_custom_call.1} parent=1 // pred_fallthru
      _
    %623 = vsyncpa [#allocation5], 1
    %624 = vsyncpa [#allocation6], 1
    %625 = vsyncpa [#allocation9], 1

</llo_original>
